<compile_context>
chip_gen: v5e
topology: v5e:2x2
jax: 0.10.0
libtpu: 0.0.40
codegen_flags: <defaults>
</compile_context>

<pallas_src>
import functools

import jax
import jax.numpy as jnp
from jax.experimental import pallas as pl
from jax.experimental.pallas import tpu as pltpu


_LANE = 128
_SUBLANE = 8
_SLACK_BYTES = 2 << 20        # compiler scratch / layout-padding headroom
_TARGET_TILE_BYTES = 8 << 20  # ~8 MiB x/out tiles
_MIN_GRID_STEPS = 8           # >= ~4 pipelined steps per TensorCore on v7x


def _round_up(x, m):
    return (x + m - 1) // m * m


def _vmem_budget_bytes():
    """Conservative scoped-VMEM budget (well under physical VMEM per TC)."""
    try:
        cap = int(getattr(pltpu.get_tpu_info(), "vmem_capacity_bytes", 64 << 20))
    except Exception:
        cap = 64 << 20  # v7x per-TC physical VMEM (smallest of v5e/v6e/v7x)
    return max(cap * 3 // 4, 36 << 20)


def xsrelu_cw_kernel(x_ref, w_ref, o_ref, *, inv_n):
    # x_ref: (bm, N) tile of the (B*C, H*W) view
    # w_ref: (bm, 1) per-row (weight - 1), pipelined per tile
    x = x_ref[...]

    relu_x = jnp.maximum(x, 0.0)
    # channel-wise RMS of the positive part; sum on XLU, 1/N folded in, sqrt on
    # EUP; the 0.02 shift is applied while still (bm, 1)-narrow.
    ssq = jnp.sum(relu_x * relu_x, axis=-1, keepdims=True)      # (bm, 1)
    s2 = jnp.sqrt(ssq * inv_n + 1e-8) - 0.02                    # (bm, 1)

    t = x - s2                                                  # = y + 0.02
    a_high = jnp.maximum(t, 0.0)                                # relu(y + 0.02)
    m = jnp.minimum(a_high, 0.04)                               # a_high - a_low
    # out = a_low + w*m == a_high + (w - 1)*m ; w_ref already holds (w - 1).
    o_ref[...] = a_high + w_ref[...] * m


def _xsrelu_cw_param_jax(x, weight):
    """Pure-JAX reference / fallback of the (intended) forward pass."""
    B, C, H, W = x.shape
    xf = x.reshape(B * C, -1)
    s = jnp.sqrt(jnp.mean(jnp.clip(xf, 0.0, None) ** 2, axis=-1) + 1e-8)
    s = s.reshape(B, C, 1, 1)
    y = x - s
    a_low = jax.nn.relu(y - 0.02)
    a_high = jax.nn.relu(y + 0.02)
    return a_low + (a_high - a_low) * weight.reshape(1, C, 1, 1)


def _pick_block_rows(M, N, itemsize, budget):
    """Rows per tile: ~8 MiB tiles, >= _MIN_GRID_STEPS blocks, within budget."""
    if M <= _SUBLANE:
        return M  # full-extent sublane block is legal for any M
    # VMEM bytes per tile row: x + out (double-buffered) plus the lane-padded
    # (bm, 1) weight tile (also double-buffered).
    per_row_bytes = 4 * N * itemsize + 2 * _LANE * itemsize
    rows_target = max(_SUBLANE,
                      (_TARGET_TILE_BYTES // (N * itemsize)) // _SUBLANE * _SUBLANE)
    rows_for_steps = max(_SUBLANE,
                         _round_up(pl.cdiv(M, _MIN_GRID_STEPS), _SUBLANE))
    rows_by_budget = max(_SUBLANE,
                         ((budget - _SLACK_BYTES) // per_row_bytes)
                         // _SUBLANE * _SUBLANE)
    return min(rows_target, rows_for_steps, rows_by_budget)


def xsrelu_cw_param(x, weight, *, block_rows=None):
    """x: (B, C, H, W) float32; weight: (C,) float32."""
    B, C, H, W = x.shape
    M, N = B * C, H * W
    itemsize = jnp.dtype(x.dtype).itemsize
    budget = _vmem_budget_bytes()

    # Minimum pipeline footprint is 4 * 8 * N * itemsize (+ weight tiles); if
    # even that does not fit the VMEM budget, use the plain JAX path.
    # TODO(synk): very large H*W would need a second ("arbitrary") lane-axis
    # grid dim with a two-pass ssq accumulator in VMEM scratch.
    min_footprint = _SUBLANE * (4 * N * itemsize + 2 * _LANE * itemsize)
    if min_footprint + _SLACK_BYTES > budget:
        return _xsrelu_cw_param_jax(x, weight)

    if block_rows is None:
        block_rows = _pick_block_rows(M, N, itemsize, budget)
    else:
        # Sanitize a user-supplied value to the (8, 128) sublane constraint.
        block_rows = max(_SUBLANE, _round_up(int(block_rows), _SUBLANE))
        block_rows = min(block_rows, _round_up(M, _SUBLANE))

    grid_rows = pl.cdiv(M, block_rows)

    x2 = x.reshape(M, N)
    # Rows are ordered b*C + c, so tiling the per-channel weight B times lines
    # up. Fold the "-1" of out = a_high + (w - 1) * min(a_high, 0.04) in here.
    # No row padding needed: the edge block's extra rows read unspecified data
    # (possibly NaN after compute) but their writeback is masked — do not
    # "optimize" the partial edge block away.
    w2 = (jnp.tile(weight.astype(x.dtype), B) - 1.0).reshape(M, 1)

    # VMEM accounting: double-buffered x and out tiles plus the (bm, 1) weight
    # tile, which is lane-padded to 128 in VMEM (x2 pipeline buffers), + slack.
    tile_bytes = block_rows * N * itemsize
    w_tile_bytes = block_rows * _LANE * itemsize
    vmem_limit = 4 * tile_bytes + 2 * w_tile_bytes + _SLACK_BYTES
    vmem_limit = min(max(int(vmem_limit), 32 << 20), int(budget))

    kernel = functools.partial(xsrelu_cw_kernel, inv_n=1.0 / N)

    out2 = pl.pallas_call(
        kernel,
        out_shape=jax.ShapeDtypeStruct((M, N), x.dtype),
        grid_spec=pltpu.PrefetchScalarGridSpec(
            num_scalar_prefetch=0,
            grid=(grid_rows,),
            in_specs=[
                pl.BlockSpec((block_rows, N), lambda i: (i, 0)),
                # Tiny per-tile weight block; its DMA hides behind the x DMA.
                pl.BlockSpec((block_rows, 1), lambda i: (i, 0)),
            ],
            out_specs=pl.BlockSpec((block_rows, N), lambda i: (i, 0)),
        ),
        compiler_params=pltpu.CompilerParams(
            dimension_semantics=("parallel",),
            vmem_limit_bytes=int(vmem_limit),
        ),
    )(x2, w2)
    return out2.reshape(B, C, H, W)


if __name__ == "__main__":
    key = jax.random.PRNGKey(0)
    k1, k2, k3, kw = jax.random.split(key, 4)

    # Module-consistent case: __init__(plogit=1) -> weight repeated to C.
    B, C, H, W = 2, 4, 16, 16
    x = jax.random.normal(k1, (B, C, H, W), dtype=jnp.float32)
    weight = jnp.full((C,), 1.0, dtype=jnp.float32)
    out = jax.block_until_ready(xsrelu_cw_param(x, weight))
    assert out.shape == (B, C, H, W) and out.dtype == jnp.float32
    assert jnp.allclose(out, _xsrelu_cw_param_jax(x, weight), atol=1e-5, rtol=1e-5)

    # Non-trivial per-channel weights + a row count (M = 15) that exercises the
    # masked edge block (block_rows = 8 does not divide 15).
    x2 = jax.random.normal(k2, (3, 5, 16, 16), dtype=jnp.float32)
    wch = jax.random.normal(kw, (5,), dtype=jnp.float32)
    out2 = jax.block_until_ready(xsrelu_cw_param(x2, wch))
    assert jnp.allclose(out2, _xsrelu_cw_param_jax(x2, wch), atol=1e-5, rtol=1e-5)

    # Small, non-128-multiple spatial map (masked lane-store path).
    x3 = jax.random.normal(k3, (2, 4, 7, 9), dtype=jnp.float32)
    w3 = jnp.linspace(0.5, 1.5, 4, dtype=jnp.float32)
    out3 = jax.block_until_ready(xsrelu_cw_param(x3, w3))
    assert jnp.allclose(out3, _xsrelu_cw_param_jax(x3, w3), atol=1e-5, rtol=1e-5)

    print("KERNEL_OK")
</pallas_src>

<mosaic_0001>
module attributes {stable_mosaic.version = 11 : i64} {
  func.func @xsrelu_cw_kernel(%arg0: i32, %arg1: memref<8x256xf32, #tpu.memory_space<vmem>>, %arg2: memref<8x1xf32, #tpu.memory_space<vmem>>, %arg3: memref<8x256xf32, #tpu.memory_space<vmem>>) attributes {dimension_semantics = [#tpu.dimension_semantics<parallel>], iteration_bounds = array<i64: 1>, scalar_prefetch = 0 : i64, scratch_operands = 0 : i64, tpu.core_type = #tpu.core_type<tc>, window_params = [{transform_indices = @transform_0, window_bounds = array<i64: 8, 256>}, {transform_indices = @transform_1, window_bounds = array<i64: 8, 1>}, {transform_indices = @transform_2, window_bounds = array<i64: 8, 256>}]} {
    %c0 = arith.constant 0 : index
    %c0_0 = arith.constant 0 : index
    %0 = vector.load %arg1[%c0, %c0_0] : memref<8x256xf32, #tpu.memory_space<vmem>>, vector<8x256xf32>
    %cst = arith.constant 0.000000e+00 : f32
    %1 = vector.broadcast %cst : f32 to vector<8x256xf32>
    %2 = arith.maximumf %0, %1 : vector<8x256xf32>
    %3 = arith.mulf %2, %2 : vector<8x256xf32>
    %cst_1 = arith.constant dense<0.000000e+00> : vector<8xf32>
    %4 = vector.multi_reduction <add>, %3, %cst_1 [1] : vector<8x256xf32> to vector<8xf32>
    %5 = vector.shape_cast %4 : vector<8xf32> to vector<8x1xf32>
    %cst_2 = arith.constant 3.906250e-03 : f32
    %6 = vector.broadcast %cst_2 : f32 to vector<8x1xf32>
    %7 = arith.mulf %5, %6 : vector<8x1xf32>
    %cst_3 = arith.constant 9.99999993E-9 : f32
    %8 = vector.broadcast %cst_3 : f32 to vector<8x1xf32>
    %9 = arith.addf %7, %8 : vector<8x1xf32>
    %10 = math.sqrt %9 : vector<8x1xf32>
    %cst_4 = arith.constant 2.000000e-02 : f32
    %11 = vector.broadcast %cst_4 : f32 to vector<8x1xf32>
    %12 = arith.subf %10, %11 : vector<8x1xf32>
    %13 = vector.broadcast %12 : vector<8x1xf32> to vector<8x256xf32>
    %14 = arith.subf %0, %13 : vector<8x256xf32>
    %cst_5 = arith.constant 0.000000e+00 : f32
    %15 = vector.broadcast %cst_5 : f32 to vector<8x256xf32>
    %16 = arith.maximumf %14, %15 : vector<8x256xf32>
    %cst_6 = arith.constant 4.000000e-02 : f32
    %17 = vector.broadcast %cst_6 : f32 to vector<8x256xf32>
    %18 = arith.minimumf %16, %17 : vector<8x256xf32>
    %c0_7 = arith.constant 0 : index
    %c0_8 = arith.constant 0 : index
    %19 = vector.load %arg2[%c0_7, %c0_8] : memref<8x1xf32, #tpu.memory_space<vmem>>, vector<8x1xf32>
    %20 = vector.broadcast %19 : vector<8x1xf32> to vector<8x256xf32>
    %21 = arith.mulf %20, %18 : vector<8x256xf32>
    %22 = arith.addf %16, %21 : vector<8x256xf32>
    %c0_9 = arith.constant 0 : index
    %c0_10 = arith.constant 0 : index
    %23 = vector.load %arg3[%c0_9, %c0_10] : memref<8x256xf32, #tpu.memory_space<vmem>>, vector<8x256xf32>
    tpu.vector_store %arg3[%c0_9, %c0_10], %22 {strides = array<i32>} : memref<8x256xf32, #tpu.memory_space<vmem>>, vector<8x256xf32>,
    return
  }
  func.func @transform_0(%arg0: i32) -> (i32, i32) {
    %c0_i32 = arith.constant 0 : i32
    %c0_i32_0 = arith.constant 0 : i32
    return %arg0, %c0_i32 : i32, i32
  }
  func.func @transform_1(%arg0: i32) -> (i32, i32) {
    %c0_i32 = arith.constant 0 : i32
    %c0_i32_0 = arith.constant 0 : i32
    return %arg0, %c0_i32 : i32, i32
  }
  func.func @transform_2(%arg0: i32) -> (i32, i32) {
    %c0_i32 = arith.constant 0 : i32
    %c0_i32_0 = arith.constant 0 : i32
    return %arg0, %c0_i32 : i32, i32
  }
}

</mosaic_0001>

<llo_original>
// kernel: tpu_custom_call.1
$region0: #{tpu_custom_call.1}
  #allocation0 [shape = 'u32[]', space=smem, size = 0x4, offset = 0x4, fixed_abs, tag = 'smem constant byte address 0x4 - core index']
  #allocation1 [shape = 'u32[72,128]{1,0:T(1,128)}', space=vmem, size = 0x9000, scoped, tag = 'internal scratch']
  %s0 = inlined_call_operand.hbm [shape: f32[8,256], index: 0, kind: input, shape index: {}]
  %s1 = inlined_call_operand.vmem [shape: f32[8,1], index: 1, kind: input, shape index: {}]
  %s2 = inlined_call_operand.hbm [shape: f32[8,256], index: 2, kind: output, shape index: {}]
  %s3 = sld [smem:[#allocation0]]
  $region22: #{tpu_custom_call.1} parent=0
    _
  %s5 = ssub.s32 1, %s3
  %s6 = scalar_select 0, %s5, %s3
  $region1: #{tpu_custom_call.1} parent=0
    #allocation2 [shape = 'u8[8192]{0}', space=vmem, size = 0x2000, scoped, tag = 'input window, operand 0, single buffered']
    #allocation3 [shape = 's32[1]{0}', space=sflag, size = 0x4, scoped, tag = 'scoped memory for tpu_custom_call.1']
    #allocation4 [shape = 's32[1]{0}', space=sflag, size = 0x4, scoped, tag = 'scoped memory for tpu_custom_call.1']
    #allocation5 [shape = 'u8[8192]{0}', space=vmem, size = 0x2000, scoped, tag = 'output window, operand 0, single buffered']
    %7 = vsyncpa [#allocation3], 0
    %8 = vsyncpa [#allocation4], 0
    // Predicated region
    $region2: #{tpu_custom_call.1} parent=1 // pred_check
      _
    $region3: #{tpu_custom_call.1} parent=1 // pred_check_branch
      %10 = sbr.rel (0) target = $region5
    $region4: #{tpu_custom_call.1} parent=1 // pred_region
      %12 = vsyncadd [#allocation3], 0
      %s14 = sshll.u32 %s0, 4
      %s15 = int_to_ptr.hbm [resolvable:$true] %s14
      %s16 = sshll.u32 [#allocation2], 4
      %s17 = int_to_ptr.vmem [resolvable:$true] %s16
      %19 = dma.hbm_to_vmem [thread:$0]  %s15, 256, %s17, [#allocation3]
    $region5: #{tpu_custom_call.1} parent=1 // pred_fallthru
      _
    // Predicated region
    $region6: #{tpu_custom_call.1} parent=1 // pred_check
      _
    $region7: #{tpu_custom_call.1} parent=1 // pred_check_branch
      %21 = sbr.rel (0) target = $region9
    $region8: #{tpu_custom_call.1} parent=1 // pred_region
      _
    $region9: #{tpu_custom_call.1} parent=1 // pred_fallthru
      _
    // Predicated region
    $region10: #{tpu_custom_call.1} parent=1 // pred_check
      _
    $region11: #{tpu_custom_call.1} parent=1 // pred_check_branch
      %23 = sbr.rel (0) target = $region13
    $region12: #{tpu_custom_call.1} parent=1 // pred_region
      %25 = dma.done [#allocation3], 256
    $region13: #{tpu_custom_call.1} parent=1 // pred_fallthru
      _
    %v26 = vld [vmem:[#allocation2] sm:$0xff]
    %v27 = vld [vmem:[#allocation2 + $0x8] sm:$0xff]
    %v28 = vmax.f32 %v26, 0.0
    %v29 = vmax.f32 %v27, 0.0
    %v30 = vmul.f32 %v28, %v28
    %v31 = vmul.f32 %v29, %v29
    %v32 = vadd.f32 %v30, %v31
    %33 = vadd.xlane.f32.xlu0 %v32
    %v34 = vpop.xlane.xlu0 %33
    %v35 = vmul.f32 %v34, 0.00390625
    %v36 = vadd.f32 %v35, 1e-08
    %v37 = vrsqrt.pop %v36
    %v38 = vmul.f32 %v37, %v36
    %v39 = vmul.f32 %v38, %v37
    %v40 = vmul.f32 0.5, %v39
    %v41 = vsub.f32 1.5, %v40
    %v42 = vmul.f32 %v37, %v41
    %v43 = vmul.f32 %v36, %v42
    %vm44 = vcmp.eq.f32.partialorder %v36, inf
    %v45 = vsel %vm44, %v36, %v43
    %vm46 = vcmp.eq.f32.partialorder %v36, 0.0
    %v47 = vand.u32 %v36, 2147483648
    %v48 = vsel %vm46, %v47, %v45
    %v49 = vsub.f32 %v48, 0.02
    %v50 = vsub.f32 %v26, %v49
    %v51 = vsub.f32 %v27, %v49
    %v52 = vmax.f32 %v50, 0.0
    %v53 = vmax.f32 %v51, 0.0
    %v54 = vmin.f32 %v52, 0.04
    %v55 = vmin.f32 %v53, 0.04
    %v56 = vld [vmem:[%s1] sm:$0xff]
    %58 = vset.pattern.permute.xlu0 0
    %59 = vperm.xlu0 %58, %v56
    %v60 = vpop.permute.xlu0 %59
    %v62 = vmul.f32 %v60, %v54
    %v63 = vmul.f32 %v60, %v55
    %v64 = vadd.f32 %v52, %v62
    %v65 = vadd.f32 %v53, %v63
    %66 = vst [vmem:[#allocation5] sm:$0xff] %v64
    %67 = vst [vmem:[#allocation5 + $0x8] sm:$0xff] %v65
    // Predicated region
    $region14: #{tpu_custom_call.1} parent=1 // pred_check
      _
    $region15: #{tpu_custom_call.1} parent=1 // pred_check_branch
      %69 = sbr.rel (0) target = $region17
    $region16: #{tpu_custom_call.1} parent=1 // pred_region
      %71 = vsyncadd [#allocation4], 0
      %s73 = sshll.u32 [#allocation5], 4
      %s74 = int_to_ptr.vmem [resolvable:$true] %s73
      %s75 = sshll.u32 %s2, 4
      %s76 = int_to_ptr.hbm [resolvable:$true] %s75
      %78 = dma.vmem_to_hbm [thread:$0]  %s74, 256, %s76, [#allocation4]
    $region17: #{tpu_custom_call.1} parent=1 // pred_fallthru
      _
    // Predicated region
    $region18: #{tpu_custom_call.1} parent=1 // pred_check
      _
    $region19: #{tpu_custom_call.1} parent=1 // pred_check_branch
      %80 = sbr.rel (0) target = $region21
    $region20: #{tpu_custom_call.1} parent=1 // pred_region
      %82 = dma.done [#allocation4], 256
    $region21: #{tpu_custom_call.1} parent=1 // pred_fallthru
      _
    %83 = vsyncpa [#allocation3], 1
    %84 = vsyncpa [#allocation4], 1

</llo_original>
